<compile_context>
chip_gen: v7x
topology: tpu7x:2x2x1
jax: 0.10.0
libtpu: 0.0.40
codegen_flags: <defaults>
</compile_context>

<pallas_src>
import numpy as np
import jax
import jax.numpy as jnp
from jax.experimental import pallas as pl
from jax.experimental.pallas import tpu as pltpu

TB = 128                          # lane-block width (vreg lanes; v5e MXU is 128-wide)
_VMEM_LIMIT = 32 * 1024 * 1024    # explicit scoped-VMEM budget, safe on v5e/v6e/v7x


# ----------------------------------------------------------------------------
# Kernel 1: elementwise hinge errors, one lane-dense row (image) per grid step
# ----------------------------------------------------------------------------
def hinge_errors_kernel(logit_ref, label_ref, err_ref):
    signs = 2.0 * label_ref[...] - 1.0
    err_ref[...] = 1.0 - logit_ref[...] * signs


def hinge_errors(logits_f, labels_f):
    B, _, P = logits_f.shape
    row = pl.BlockSpec((None, 1, P), lambda b: (b, 0, 0))
    return pl.pallas_call(
        hinge_errors_kernel,
        out_shape=jax.ShapeDtypeStruct((B, 1, P), jnp.float32),
        grid_spec=pltpu.PrefetchScalarGridSpec(
            num_scalar_prefetch=0,
            grid=(B,),
            in_specs=[row, row],
            out_specs=row,
        ),
        compiler_params=pltpu.CompilerParams(
            dimension_semantics=("parallel",),
            vmem_limit_bytes=_VMEM_LIMIT),
    )(logits_f, labels_f)


# ----------------------------------------------------------------------------
# Kernel 2: per-image Lovász hinge reduction with a blocked (128-wide) cumsum
# ----------------------------------------------------------------------------
def lovasz_reduce_kernel(tri_ref, e_ref, g_ref, carry_ref, gts_ref, out_ref):
    e = e_ref[...]             # (NB, TB) f32  hinge errors, sorted desc, row-major flat
    g = g_ref[...]             # (NB, TB) bf16 labels (0/1) in the same order
    tri = tri_ref[...]         # (TB, TB) bf16 tri[u, t] = (u <= t)
    carry = carry_ref[...]     # (NB, 1)  f32  exclusive cross-block prefix of label sums
    gts = gts_ref[...]         # (NB, 1)  f32  total positives of this image (replicated)
    NB, TBk = e.shape

    # Intra-block inclusive prefix sums on the MXU (M = NB rows; 0/1 bf16 inputs are
    # exact, accumulation in f32), plus the cross-block carry -> full inclusive cumsum.
    cum = jnp.dot(g, tri, preferred_element_type=jnp.float32) + carry      # (NB, TB)

    n_i = jax.lax.broadcasted_iota(jnp.int32, (NB, TBk), 0)
    t_i = jax.lax.broadcasted_iota(jnp.int32, (NB, TBk), 1)
    idx = (n_i * TBk + t_i + 1).astype(jnp.float32)                        # 1-based flat pos

    # union >= 1 always (idx >= 1, cum <= idx), so the division is safe.
    jaccard = 1.0 - (gts - cum) / (gts + idx - cum)                        # (NB, TB)

    # lovasz grad: grad[i] = jac[i] - jac[i-1], grad[0] = jac[0].
    # In-block predecessor via a lane roll; at block seams (t == 0) recompute the
    # previous block's last jaccard from the carry (the cumsum there equals `carry`).
    rolled = pltpu.roll(jaccard, shift=1, axis=1)
    idx_prev = (n_i * TBk).astype(jnp.float32)
    prev_seam = 1.0 - (gts - carry) / (gts + idx_prev - carry)
    prev = jnp.where(t_i == 0, prev_seam, rolled)
    prev = jnp.where((t_i == 0) & (n_i == 0), 0.0, prev)
    grad = jaccard - prev

    # dot(relu(errors_sorted), grad) for this image; padded tail has grad == 0 exactly.
    loss_b = jnp.sum(jnp.maximum(e, 0.0) * grad)
    out_ref[...] = jnp.zeros((1, 1), jnp.float32) + loss_b


def lovasz_hinge_loss(prediction, gt):
    """Equivalent of Loss().forward(prediction, gt) for NCHW binary logits."""
    B = prediction.shape[0]
    P = int(np.prod(prediction.shape[1:]))
    logits_f = prediction.reshape(B, 1, P).astype(jnp.float32)
    labels_f = gt.reshape(B, 1, P).astype(jnp.float32)

    # (1) hinge errors (Pallas, per-image lane-dense rows)
    errors = hinge_errors(logits_f, labels_f).reshape(B, P)
    labels = labels_f.reshape(B, P)

    # (2) descending co-sort of (errors, labels).
    # TODO(synk): no Pallas/Mosaic sort primitive on TPU; done with one stable
    # co-sorting jax.lax.sort (replaces argsort + two take_along_axis gathers).
    neg_sorted, gt_sorted = jax.lax.sort((-errors, labels), dimension=-1, num_keys=1)
    errors_sorted = -neg_sorted

    # (3) pad flat length to a multiple of TB. The padded tail has g = 0, so its
    # jaccard is exactly 1 and its gradient exactly 0 -> contributes nothing.
    NB = pl.cdiv(P, TB)
    P_pad = NB * TB
    if P_pad != P:
        padw = ((0, 0), (0, P_pad - P))
        errors_sorted = jnp.pad(errors_sorted, padw)
        gt_sorted = jnp.pad(gt_sorted, padw)

    e3 = errors_sorted.reshape(B, NB, TB)
    g3 = gt_sorted.reshape(B, NB, TB)

    # Tiny O(B*NB) cross-block bookkeeping computed in XLA glue:
    block_sums = jnp.sum(g3, axis=-1)                                    # (B, NB)
    carry = (jnp.cumsum(block_sums, axis=-1) - block_sums)[:, :, None]   # exclusive, (B, NB, 1)
    gts = jnp.broadcast_to(
        jnp.sum(block_sums, axis=-1, keepdims=True)[:, :, None], (B, NB, 1))

    # TB x TB inclusive-prefix matrix, built once in the wrapper (0/1 is bf16-exact),
    # kept VMEM-resident across the batch grid via a constant index_map.
    tri = (jnp.arange(TB)[:, None] <= jnp.arange(TB)[None, :]).astype(jnp.bfloat16)

    per_image = pl.pallas_call(
        lovasz_reduce_kernel,
        out_shape=jax.ShapeDtypeStruct((B, 1, 1), jnp.float32),
        grid_spec=pltpu.PrefetchScalarGridSpec(
            num_scalar_prefetch=0,
            grid=(B,),
            in_specs=[
                pl.BlockSpec((TB, TB), lambda b: (0, 0)),            # tri (resident)
                pl.BlockSpec((None, NB, TB), lambda b: (b, 0, 0)),   # errors_sorted
                pl.BlockSpec((None, NB, TB), lambda b: (b, 0, 0)),   # gt_sorted (bf16)
                pl.BlockSpec((None, NB, 1), lambda b: (b, 0, 0)),    # cross-block carry
                pl.BlockSpec((None, NB, 1), lambda b: (b, 0, 0)),    # total positives
            ],
            out_specs=pl.BlockSpec((None, 1, 1), lambda b: (b, 0, 0)),
        ),
        compiler_params=pltpu.CompilerParams(
            dimension_semantics=("parallel",),
            vmem_limit_bytes=_VMEM_LIMIT),
    )(tri, e3, g3.astype(jnp.bfloat16), carry.astype(jnp.float32),
      gts.astype(jnp.float32))

    # per_image=True => mean over images
    return jnp.mean(per_image)


# ----------------------------------------------------------------------------
# Pure-JAX reference (mirrors the PyTorch lovasz_hinge semantics)
# ----------------------------------------------------------------------------
def lovasz_hinge_ref(prediction, gt):
    B = prediction.shape[0]
    logits = prediction.reshape(B, -1).astype(jnp.float32)
    labels = gt.reshape(B, -1).astype(jnp.float32)

    def per_image(lg, lb):
        signs = 2.0 * lb - 1.0
        errors = 1.0 - lg * signs
        perm = jnp.argsort(-errors)
        es = errors[perm]
        gs = lb[perm]
        gts = gs.sum()
        inter = gts - jnp.cumsum(gs)
        union = gts + jnp.cumsum(1.0 - gs)
        jac = 1.0 - inter / union
        grad = jnp.concatenate([jac[:1], jac[1:] - jac[:-1]])
        return jnp.sum(jnp.maximum(es, 0.0) * grad)

    return jnp.mean(jax.vmap(per_image)(logits, labels))


if __name__ == "__main__":
    key = jax.random.PRNGKey(0)
    k1, k2, k3, k4 = jax.random.split(key, 4)

    # NCHW binary logits, C=1
    B, C, H, W = 2, 1, 16, 16
    prediction = jax.random.normal(k1, (B, C, H, W), dtype=jnp.float32)
    gt = jax.random.bernoulli(k2, 0.4, (B, C, H, W)).astype(jnp.float32)

    loss = jax.block_until_ready(lovasz_hinge_loss(prediction, gt))
    ref = jax.block_until_ready(lovasz_hinge_ref(prediction, gt))
    assert jnp.isfinite(loss), "loss is not finite"
    assert abs(float(loss) - float(ref)) < 1e-4, (float(loss), float(ref))

    # Non-multiple-of-128 flat size exercises the padded-tail path.
    prediction2 = jax.random.normal(k3, (2, 1, 9, 9), dtype=jnp.float32)
    gt2 = jax.random.bernoulli(k4, 0.4, (2, 1, 9, 9)).astype(jnp.float32)
    loss2 = jax.block_until_ready(lovasz_hinge_loss(prediction2, gt2))
    ref2 = jax.block_until_ready(lovasz_hinge_ref(prediction2, gt2))
    assert jnp.isfinite(loss2), "padded loss is not finite"
    assert abs(float(loss2) - float(ref2)) < 1e-4, (float(loss2), float(ref2))

    print("KERNEL_OK")
</pallas_src>

<mosaic_0001>
module attributes {stable_mosaic.version = 11 : i64} {
  func.func @hinge_errors_kernel(%arg0: i32, %arg1: memref<1x1x256xf32, #tpu.memory_space<vmem>>, %arg2: memref<1x1x256xf32, #tpu.memory_space<vmem>>, %arg3: memref<1x1x256xf32, #tpu.memory_space<vmem>>) attributes {dimension_semantics = [#tpu.dimension_semantics<parallel>], iteration_bounds = array<i64: 2>, scalar_prefetch = 0 : i64, scratch_operands = 0 : i64, tpu.core_type = #tpu.core_type<tc>, window_params = [{transform_indices = @transform_0, window_bounds = array<i64: 1, 1, 256>}, {transform_indices = @transform_1, window_bounds = array<i64: 1, 1, 256>}, {transform_indices = @transform_2, window_bounds = array<i64: 1, 1, 256>}]} {
    %c0 = arith.constant 0 : index
    %c0_0 = arith.constant 0 : index
    %c0_1 = arith.constant 0 : index
    %0 = vector.load %arg2[%c0, %c0_0, %c0_1] : memref<1x1x256xf32, #tpu.memory_space<vmem>>, vector<1x1x256xf32>
    %1 = vector.shape_cast %0 : vector<1x1x256xf32> to vector<1x256xf32>
    %cst = arith.constant 2.000000e+00 : f32
    %2 = vector.broadcast %cst : f32 to vector<1x256xf32>
    %3 = arith.mulf %2, %1 : vector<1x256xf32>
    %cst_2 = arith.constant 1.000000e+00 : f32
    %4 = vector.broadcast %cst_2 : f32 to vector<1x256xf32>
    %5 = arith.subf %3, %4 : vector<1x256xf32>
    %c0_3 = arith.constant 0 : index
    %c0_4 = arith.constant 0 : index
    %c0_5 = arith.constant 0 : index
    %6 = vector.load %arg1[%c0_3, %c0_4, %c0_5] : memref<1x1x256xf32, #tpu.memory_space<vmem>>, vector<1x1x256xf32>
    %7 = vector.shape_cast %6 : vector<1x1x256xf32> to vector<1x256xf32>
    %8 = arith.mulf %7, %5 : vector<1x256xf32>
    %cst_6 = arith.constant 1.000000e+00 : f32
    %9 = vector.broadcast %cst_6 : f32 to vector<1x256xf32>
    %10 = arith.subf %9, %8 : vector<1x256xf32>
    %c0_7 = arith.constant 0 : index
    %c0_8 = arith.constant 0 : index
    %c0_9 = arith.constant 0 : index
    %11 = vector.load %arg3[%c0_7, %c0_8, %c0_9] : memref<1x1x256xf32, #tpu.memory_space<vmem>>, vector<1x1x256xf32>
    %12 = vector.shape_cast %11 : vector<1x1x256xf32> to vector<1x256xf32>
    %13 = vector.shape_cast %10 : vector<1x256xf32> to vector<1x1x256xf32>
    tpu.vector_store %arg3[%c0_7, %c0_8, %c0_9], %13 {strides = array<i32>} : memref<1x1x256xf32, #tpu.memory_space<vmem>>, vector<1x1x256xf32>,
    return
  }
  func.func @transform_0(%arg0: i32) -> (i32, i32, i32) {
    %c0_i32 = arith.constant 0 : i32
    %c0_i32_0 = arith.constant 0 : i32
    %c0_i32_1 = arith.constant 0 : i32
    return %arg0, %c0_i32, %c0_i32_0 : i32, i32, i32
  }
  func.func @transform_1(%arg0: i32) -> (i32, i32, i32) {
    %c0_i32 = arith.constant 0 : i32
    %c0_i32_0 = arith.constant 0 : i32
    %c0_i32_1 = arith.constant 0 : i32
    return %arg0, %c0_i32, %c0_i32_0 : i32, i32, i32
  }
  func.func @transform_2(%arg0: i32) -> (i32, i32, i32) {
    %c0_i32 = arith.constant 0 : i32
    %c0_i32_0 = arith.constant 0 : i32
    %c0_i32_1 = arith.constant 0 : i32
    return %arg0, %c0_i32, %c0_i32_0 : i32, i32, i32
  }
}

</mosaic_0001>

<llo_original>
// kernel: tpu_custom_call.1
$region0: #{tpu_custom_call.1}
  #allocation0 [shape = 'u32[]', space=smem, size = 0x4, offset = 0x4, fixed_abs, tag = 'smem constant byte address 0x4 - core index']
  #allocation1 [shape = 'u32[144,128]{1,0:T(1,128)}', space=vmem, size = 0x12000, scoped, tag = 'internal scratch']
  %s0 = inlined_call_operand.hbm [shape: f32[2,1,256], index: 0, kind: input, shape index: {}]
  %s1 = inlined_call_operand.hbm [shape: f32[2,1,256], index: 1, kind: input, shape index: {}]
  %s2 = inlined_call_operand.hbm [shape: f32[2,1,256], index: 2, kind: output, shape index: {}]
  %s3 = sld [smem:[#allocation0]]
  $region49: #{tpu_custom_call.1} parent=0
    _
  %s5 = ssub.s32 1, %s3
  %s6 = scalar_select 0, %s5, %s3
  $region1: #{tpu_custom_call.1} parent=0
    #allocation2 [shape = 'u8[2048]{0}', space=vmem, size = 0x800, scoped, tag = 'input window, operand 0']
    #allocation3 [shape = 's32[2]{0}', space=sflag, size = 0x8, scoped, tag = 'scoped memory for tpu_custom_call.1']
    #allocation4 [shape = 's32[2]{0}', space=sflag, size = 0x8, scoped, tag = 'scoped memory for tpu_custom_call.1']
    #allocation5 [shape = 'u8[2048]{0}', space=vmem, size = 0x800, scoped, tag = 'input window, operand 1']
    #allocation6 [shape = 's32[2]{0}', space=sflag, size = 0x8, scoped, tag = 'scoped memory for tpu_custom_call.1']
    #allocation7 [shape = 'u8[2048]{0}', space=vmem, size = 0x800, scoped, tag = 'output window, operand 0']
    %7 = vsyncpa [#allocation3], 0
    %s8 = scalar_lea.sflag [#allocation3], 1
    %9 = vsyncpa %s8, 0
    %10 = vsyncpa [#allocation6], 0
    %s11 = scalar_lea.sflag [#allocation6], 1
    %12 = vsyncpa %s11, 0
    %13 = vsyncpa [#allocation4], 0
    %s14 = scalar_lea.sflag [#allocation4], 1
    %15 = vsyncpa %s14, 0
    loop: start=0, step=1, limit=4
    $region2: #{tpu_custom_call.1} parent=1 // loop_pre_header
      _
    $region3: #{tpu_custom_call.1} parent=1 // loop_header
      %s17 = sphi 0, %s21
      %p18 = scmp.ge.s32.totalorder %s17, 4
      %s27 = sphi 0, %s29
      %s30 = sphi 0, %s27
      %s31 = sphi 0, %s30
      %s47 = sphi 0, %s31
      %s53 = sphi 0, %s55
      %s56 = sphi 0, %s53
      %s57 = sphi 0, %s56
      %s73 = sphi 0, %s57
      %s79 = sphi 0, %s81
      %s82 = sphi 0, %s79
      %s83 = sphi 0, %s82
      %s99 = sphi 0, %s83
    $region4: #{tpu_custom_call.1} parent=1 // loop_header_branch
      %20 = sbr.rel (%p18) target = $region8
    $region5: #{tpu_custom_call.1} parent=1 // loop_body
      %s22 = ssub.s32 %s17, 1
      %s23 = ssub.s32 %s17, 2
      %s24 = sadd.s32 %s17, 1
      %s25 = ssub.s32 %s17, %s24
      %p26 = scmp.eq.s32.totalorder %s25, 0
      %s28 = sadd.s32 %s27, 1
      %s29 = scalar_select %p26, %s27, %s28
      %p32 = pneg %p26
      %p33 = scmp.eq.s32.totalorder %s17, 1
      %p34 = por %p32, %p33
      %p35 = scmp.ne.s32.totalorder %s27, %s30
      %p36 = scmp.eq.s32.totalorder %s17, 0
      %p37 = por %p35, %p36
      %p38 = scmp.ne.s32.totalorder %s27, %s30
      %p39 = scmp.eq.s32.totalorder %s22, 1
      %p40 = por %p38, %p39
      %p41 = scmp.ne.s32.totalorder %s30, %s31
      %p42 = scmp.eq.s32.totalorder %s22, 0
      %p43 = por %p41, %p42
      %p44 = scmp.ne.s32.totalorder %s30, %s31
      %p45 = scmp.eq.s32.totalorder %s23, 1
      %p46 = por %p44, %p45
      %p48 = scmp.ne.s32.totalorder %s31, %s47
      %p49 = scmp.eq.s32.totalorder %s23, 0
      %p50 = por %p48, %p49
      %s51 = ssub.s32 %s17, %s24
      %p52 = scmp.eq.s32.totalorder %s51, 0
      %s54 = sadd.s32 %s53, 1
      %s55 = scalar_select %p52, %s53, %s54
      %p58 = pneg %p52
      %p59 = scmp.eq.s32.totalorder %s17, 1
      %p60 = por %p58, %p59
      %p61 = scmp.ne.s32.totalorder %s53, %s56
      %p62 = scmp.eq.s32.totalorder %s17, 0
      %p63 = por %p61, %p62
      %p64 = scmp.ne.s32.totalorder %s53, %s56
      %p65 = scmp.eq.s32.totalorder %s22, 1
      %p66 = por %p64, %p65
      %p67 = scmp.ne.s32.totalorder %s56, %s57
      %p68 = scmp.eq.s32.totalorder %s22, 0
      %p69 = por %p67, %p68
      %p70 = scmp.ne.s32.totalorder %s56, %s57
      %p71 = scmp.eq.s32.totalorder %s23, 1
      %p72 = por %p70, %p71
      %p74 = scmp.ne.s32.totalorder %s57, %s73
      %p75 = scmp.eq.s32.totalorder %s23, 0
      %p76 = por %p74, %p75
      %s77 = ssub.s32 %s17, %s24
      %p78 = scmp.eq.s32.totalorder %s77, 0
      %s80 = sadd.s32 %s79, 1
      %s81 = scalar_select %p78, %s79, %s80
      %p84 = pneg %p78
      %p85 = scmp.eq.s32.totalorder %s17, 1
      %p86 = por %p84, %p85
      %p87 = scmp.ne.s32.totalorder %s79, %s82
      %p88 = scmp.eq.s32.totalorder %s17, 0
      %p89 = por %p87, %p88
      %p90 = scmp.ne.s32.totalorder %s79, %s82
      %p91 = scmp.eq.s32.totalorder %s22, 1
      %p92 = por %p90, %p91
      %p93 = scmp.ne.s32.totalorder %s82, %s83
      %p94 = scmp.eq.s32.totalorder %s22, 0
      %p95 = por %p93, %p94
      %p96 = scmp.ne.s32.totalorder %s82, %s83
      %p97 = scmp.eq.s32.totalorder %s23, 1
      %p98 = por %p96, %p97
      %p100 = scmp.ne.s32.totalorder %s83, %s99
      %p101 = scmp.eq.s32.totalorder %s23, 0
      %p102 = por %p100, %p101
      %p103 = scmp.le.s32.totalorder 1, %s17
      %p104 = scmp.lt.s32.totalorder %s17, 3
      %p105 = pnand %p103, %p104
      %p106 = pneg %p105
      // Predicated region
      $region9: #{tpu_custom_call.1} parent=5 // pred_check
        _
      $region10: #{tpu_custom_call.1} parent=5 // pred_check_branch
        %108 = sbr.rel (%p105) target = $region12
      $region11: #{tpu_custom_call.1} parent=5 // pred_region
        %s109 = ssub.s32 %s17, 1
      $region12: #{tpu_custom_call.1} parent=5 // pred_fallthru
        _
      %p110 = scmp.lt.s32.totalorder %s17, 2
      // Predicated region
      $region13: #{tpu_custom_call.1} parent=5 // pred_check
        %p111 = pneg %p110
      $region14: #{tpu_custom_call.1} parent=5 // pred_check_branch
        %113 = sbr.rel (%p111) target = $region16
      $region15: #{tpu_custom_call.1} parent=5 // pred_region
        // Predicated region
        $region17: #{tpu_custom_call.1} parent=15 // pred_check
          %p114 = pneg %p37
        $region18: #{tpu_custom_call.1} parent=15 // pred_check_branch
          %116 = sbr.rel (%p114) target = $region20
        $region19: #{tpu_custom_call.1} parent=15 // pred_region
          %s117 = sand.u32 %s27, 1
          %s118 = scalar_lea.sflag [#allocation3], %s117
          %s119 = sand.u32 %s27, 1
          %s120 = smul.addr %s119, 2
          %s121 = scalar_lea.vmem [#allocation2], %s120
          %s123 = ssub.s32 32, 32
          %124 = vsyncadd %s118, %s123
          %s125 = smul.addr %s17, 2
          %s126 = smul.addr %s125, 16
          %s127 = scalar_lea.hbm %s0, %s126
          %s129 = sshll.u32 %s121, 4
          %s130 = int_to_ptr.vmem [resolvable:$true] %s129
          %132 = dma.hbm_to_vmem [thread:$0]  %s127, 32, %s130, %s118
        $region20: #{tpu_custom_call.1} parent=15 // pred_fallthru
          _
        // Predicated region
        $region21: #{tpu_custom_call.1} parent=15 // pred_check
          %p133 = pneg %p63
        $region22: #{tpu_custom_call.1} parent=15 // pred_check_branch
          %135 = sbr.rel (%p133) target = $region24
        $region23: #{tpu_custom_call.1} parent=15 // pred_region
          %s136 = sand.u32 %s53, 1
          %s137 = scalar_lea.sflag [#allocation6], %s136
          %s138 = sand.u32 %s53, 1
          %s139 = smul.addr %s138, 2
          %s140 = scalar_lea.vmem [#allocation5], %s139
          %s142 = ssub.s32 32, 32
          %143 = vsyncadd %s137, %s142
          %s144 = smul.addr %s17, 2
          %s145 = smul.addr %s144, 16
          %s146 = scalar_lea.hbm %s1, %s145
          %s148 = sshll.u32 %s140, 4
          %s149 = int_to_ptr.vmem [resolvable:$true] %s148
          %151 = dma.hbm_to_vmem [thread:$0]  %s146, 32, %s149, %s137
        $region24: #{tpu_custom_call.1} parent=15 // pred_fallthru
          _
      $region16: #{tpu_custom_call.1} parent=5 // pred_fallthru
        _
      %p152 = scmp.le.s32.totalorder 1, %s17
      %p153 = scmp.lt.s32.totalorder %s17, 3
      %p154 = pnand %p152, %p153
      %p155 = pneg %p154
      // Predicated region
      $region25: #{tpu_custom_call.1} parent=5 // pred_check
        _
      $region26: #{tpu_custom_call.1} parent=5 // pred_check_branch
        %157 = sbr.rel (%p154) target = $region28
      $region27: #{tpu_custom_call.1} parent=5 // pred_region
        %s158 = ssub.s32 %s17, 1
        %s159 = sand.u32 %s30, 1
        %s160 = scalar_lea.sflag [#allocation3], %s159
        %s161 = sand.u32 %s30, 1
        %s162 = smul.addr %s161, 2
        %s163 = scalar_lea.vmem [#allocation2], %s162
        // Predicated region
        $region29: #{tpu_custom_call.1} parent=27 // pred_check
          %p164 = pneg %p43
        $region30: #{tpu_custom_call.1} parent=27 // pred_check_branch
          %166 = sbr.rel (%p164) target = $region32
        $region31: #{tpu_custom_call.1} parent=27 // pred_region
          %167 = dma.done %s160, 32
        $region32: #{tpu_custom_call.1} parent=27 // pred_fallthru
          _
        %s168 = sand.u32 %s56, 1
        %s169 = scalar_lea.sflag [#allocation6], %s168
        %s170 = sand.u32 %s56, 1
        %s171 = smul.addr %s170, 2
        %s172 = scalar_lea.vmem [#allocation5], %s171
        // Predicated region
        $region33: #{tpu_custom_call.1} parent=27 // pred_check
          %p173 = pneg %p69
        $region34: #{tpu_custom_call.1} parent=27 // pred_check_branch
          %175 = sbr.rel (%p173) target = $region36
        $region35: #{tpu_custom_call.1} parent=27 // pred_region
          %176 = dma.done %s169, 32
        $region36: #{tpu_custom_call.1} parent=27 // pred_fallthru
          _
        %s177 = sand.u32 %s30, 1
        %s178 = scalar_lea.sflag [#allocation3], %s177
        %s179 = sand.u32 %s30, 1
        %s180 = smul.addr %s179, 2
        %s181 = scalar_lea.vmem [#allocation2], %s180
        %p182 = pneg %p43
        %p183 = pneg %p40
        %s184 = sand.u32 %s56, 1
        %s185 = scalar_lea.sflag [#allocation6], %s184
        %s186 = sand.u32 %s56, 1
        %s187 = smul.addr %s186, 2
        %s188 = scalar_lea.vmem [#allocation5], %s187
        %p189 = pneg %p69
        %p190 = pneg %p66
        %p191 = pneg %p95
        %p192 = pneg %p92
        %s193 = sand.u32 %s82, 1
        %s194 = scalar_lea.sflag [#allocation4], %s193
        %s195 = sand.u32 %s82, 1
        %s196 = smul.addr %s195, 2
        %s197 = scalar_lea.vmem [#allocation7], %s196
        %v198 = vld [vmem:[%s172] sm:$0x3]
        %v199 = vmul.f32 %v198, 2.0
        %v200 = vsub.f32 %v199, 1.0
        %v201 = vld [vmem:[%s163] sm:$0x3]
        %v202 = vmul.f32 %v201, %v200
        %v203 = vsub.f32 1.0, %v202
        %v204 = vlaneseq
        %vm205 = vcmp.ge.s32.totalorder %v204, 0
        %vm206 = vcmp.lt.s32.totalorder %v204, 256
        %vm207 = vmand %vm205, %vm206
        %208 = vst.msk [vmem:[%s197] sm:$0x3] %vm207, %v203
        %s209 = sand.u32 %s82, 1
        %s210 = scalar_lea.sflag [#allocation4], %s209
        %s211 = sand.u32 %s82, 1
        %s212 = smul.addr %s211, 2
        %s213 = scalar_lea.vmem [#allocation7], %s212
        // Predicated region
        $region37: #{tpu_custom_call.1} parent=27 // pred_check
          %p214 = pneg %p92
        $region38: #{tpu_custom_call.1} parent=27 // pred_check_branch
          %216 = sbr.rel (%p214) target = $region40
        $region39: #{tpu_custom_call.1} parent=27 // pred_region
          %s218 = ssub.s32 32, 32
          %219 = vsyncadd %s210, %s218
          %s220 = smul.addr %s22, 2
          %s221 = smul.addr %s220, 16
          %s222 = scalar_lea.hbm %s2, %s221
          %s224 = sshll.u32 %s213, 4
          %s225 = int_to_ptr.vmem [resolvable:$true] %s224
          %227 = dma.vmem_to_hbm [thread:$0]  %s225, 32, %s222, %s210
        $region40: #{tpu_custom_call.1} parent=27 // pred_fallthru
          _
      $region28: #{tpu_custom_call.1} parent=5 // pred_fallthru
        _
      %p228 = scmp.le.s32.totalorder 2, %s17
      // Predicated region
      $region41: #{tpu_custom_call.1} parent=5 // pred_check
        %p229 = pneg %p228
      $region42: #{tpu_custom_call.1} parent=5 // pred_check_branch
        %231 = sbr.rel (%p229) target = $region44
      $region43: #{tpu_custom_call.1} parent=5 // pred_region
        %s232 = ssub.s32 %s17, 2
        // Predicated region
        $region45: #{tpu_custom_call.1} parent=43 // pred_check
          %p233 = pneg %p98
        $region46: #{tpu_custom_call.1} parent=43 // pred_check_branch
          %235 = sbr.rel (%p233) target = $region48
        $region47: #{tpu_custom_call.1} parent=43 // pred_region
          %s236 = sand.u32 %s83, 1
          %s237 = scalar_lea.sflag [#allocation4], %s236
          %s238 = sand.u32 %s83, 1
          %s239 = smul.addr %s238, 2
          %s240 = scalar_lea.vmem [#allocation7], %s239
          %241 = dma.done %s237, 32
        $region48: #{tpu_custom_call.1} parent=43 // pred_fallthru
          _
      $region44: #{tpu_custom_call.1} parent=5 // pred_fallthru
        _
    $region6: #{tpu_custom_call.1} parent=1 // loop_footer
      %s21 = sadd.s32 1, %s17
    $region7: #{tpu_custom_call.1} parent=1 // loop_footer_branch
      %16 = sbr.rel target = $region3
    $region8: #{tpu_custom_call.1} parent=1 // loop_exit
      _
    %242 = vsyncpa [#allocation3], 1
    %s243 = scalar_lea.sflag [#allocation3], 1
    %244 = vsyncpa %s243, 1
    %245 = vsyncpa [#allocation6], 1
    %s246 = scalar_lea.sflag [#allocation6], 1
    %247 = vsyncpa %s246, 1
    %248 = vsyncpa [#allocation4], 1
    %s249 = scalar_lea.sflag [#allocation4], 1
    %250 = vsyncpa %s249, 1

</llo_original>
